<compile_context>
chip_gen: v7x
topology: tpu7x:2x2x1
jax: 0.10.0
libtpu: 0.0.40
codegen_flags: <defaults>
</compile_context>

<pallas_src>
import math

import jax
import jax.numpy as jnp
from jax.experimental import pallas as pl
from jax.experimental.pallas import tpu as pltpu


def _round_up(x, m):
    return (x + m - 1) // m * m


def _pick_tile(padded, cap, mult):
    """Largest multiple of `mult` that divides `padded` and is <= cap."""
    best = mult
    t = mult
    while t <= min(cap, padded):
        if padded % t == 0:
            best = t
        t += mult
    return best


def noisy_linear_kernel(x_ref, wmu_ref, wsig_ref, ein_ref, eout_ref,
                        bmu_ref, bsig_ref, o_ref, *maybe_acc):
    # Grid is (j=out-tiles, i=batch-tiles, k=reduction); k innermost.
    k = pl.program_id(2)
    acc_ref = maybe_acc[0] if maybe_acc else o_ref   # f32 out -> accumulate in place

    @pl.when(k == 0)
    def _init():
        acc_ref[...] = jnp.zeros_like(acc_ref)

    # Factorized noise recomputed in-kernel: [tk,1] * [1,tn] -> [tk,tn].
    # VPU broadcast work hides under MXU / weight-DMA.
    w_eps = ein_ref[...] * eout_ref[...]                       # f32 [tk, tn]
    wmu = wmu_ref[...]
    wsig = wsig_ref[...]
    if wmu.dtype == jnp.float32:
        w_eff = wmu + wsig * w_eps                             # exact f32 path
    else:
        # Noise synthesis in f32 (v5e has no bf16 VALU); cast only the MXU
        # operand. Weights were streamed from HBM already in the narrow dtype.
        w_eff = (wmu.astype(jnp.float32)
                 + wsig.astype(jnp.float32) * w_eps).astype(wmu.dtype)

    x_tile = x_ref[...]                                        # [tm, tk]
    # Plain MK x KN contraction (weights are stored pre-transposed [in, out]):
    # no transpose materialized, MXU-friendly, f32 accumulation.
    acc_ref[...] += jnp.dot(x_tile, w_eff,
                            preferred_element_type=jnp.float32)

    @pl.when(k == pl.num_programs(2) - 1)
    def _finalize():
        # bias epsilon == eps_out, so eout_ref is reused directly.
        b_eff = bmu_ref[...] + bsig_ref[...] * eout_ref[...]   # f32 [1, tn]
        if maybe_acc:
            o_ref[...] = (acc_ref[...] + b_eff).astype(o_ref.dtype)
        else:
            o_ref[...] += b_eff


def prepare_noisy_linear_params(weight_mu, weight_sigma, bias_mu, bias_sigma,
                                *, mxu_dtype=jnp.bfloat16):
    """One-time weight layout: pad out/in to multiples of 128, transpose to
    [in, out] and cast the MXU operands.  Call ONCE at init (or after a
    parameter update), NOT per forward call."""
    N, K = weight_mu.shape
    Np = _round_up(N, 128)
    Kp = _round_up(K, 128)
    f32 = jnp.float32

    def pad_transpose(w):
        wp = jnp.zeros((Np, Kp), f32).at[:N, :K].set(w.astype(f32))
        return wp.T.astype(mxu_dtype)                          # [Kp, Np]

    return dict(
        wmu_t=pad_transpose(weight_mu),
        wsig_t=pad_transpose(weight_sigma),
        bmu=jnp.zeros((1, Np), f32).at[0, :N].set(bias_mu.astype(f32)),
        bsig=jnp.zeros((1, Np), f32).at[0, :N].set(bias_sigma.astype(f32)),
        N=N, K=K, Np=Np, Kp=Kp, mxu_dtype=jnp.dtype(mxu_dtype),
    )


def noisy_linear(x, params, eps_in, eps_out, *, out_dtype=jnp.float32,
                 tm=None, tn=None, tk=None):
    """x: [B, in]; params: from prepare_noisy_linear_params;
    eps_in: [in]; eps_out: [out].  Returns [B, out] in out_dtype."""
    B, K = x.shape
    assert K == params["K"], (K, params["K"])
    N, Np, Kp = params["N"], params["Np"], params["Kp"]
    mxu_dtype = params["mxu_dtype"]
    f32 = jnp.float32

    # Batch padded only to the sublane multiple; tiles picked as divisors of
    # the padded extents (no overshoot), caps keep double-buffered tiles far
    # below VMEM limits on v5e/v6e (128 MiB) and v7x (64 MiB / 32 MiB scoped).
    Bp = _round_up(B, 8)
    tm = tm if tm is not None else _pick_tile(Bp, 512, 8)
    tn = tn if tn is not None else _pick_tile(Np, 512, 128)
    tk = tk if tk is not None else _pick_tile(Kp, 1024, 128)
    assert Bp % tm == 0 and Np % tn == 0 and Kp % tk == 0, (Bp, tm, Np, tn, Kp, tk)

    # Per-call padding: only x and the tiny noise vectors.
    xp = jnp.zeros((Bp, Kp), mxu_dtype).at[:B, :K].set(x.astype(mxu_dtype))
    ein = jnp.zeros((Kp, 1), f32).at[:K, 0].set(eps_in.astype(f32))
    eout = jnp.zeros((1, Np), f32).at[0, :N].set(eps_out.astype(f32))

    out_is_f32 = jnp.dtype(out_dtype) == jnp.dtype(jnp.float32)
    scratch = [] if out_is_f32 else [pltpu.VMEM((tm, tn), jnp.float32)]

    # j (out-features) is the leading parallel axis so that when the grid is
    # sharded across TensorCores (v7x), each core streams half the weights.
    grid = (Np // tn, Bp // tm, Kp // tk)

    out = pl.pallas_call(
        noisy_linear_kernel,
        out_shape=jax.ShapeDtypeStruct((Bp, Np), out_dtype),
        grid_spec=pltpu.PrefetchScalarGridSpec(
            num_scalar_prefetch=0,
            grid=grid,
            in_specs=[
                pl.BlockSpec((tm, tk), lambda j, i, k: (i, k)),   # x
                pl.BlockSpec((tk, tn), lambda j, i, k: (k, j)),   # W_mu^T
                pl.BlockSpec((tk, tn), lambda j, i, k: (k, j)),   # W_sigma^T
                pl.BlockSpec((tk, 1), lambda j, i, k: (k, 0)),    # eps_in (col)
                pl.BlockSpec((1, tn), lambda j, i, k: (0, j)),    # eps_out (row, = bias eps)
                pl.BlockSpec((1, tn), lambda j, i, k: (0, j)),    # bias_mu
                pl.BlockSpec((1, tn), lambda j, i, k: (0, j)),    # bias_sigma
            ],
            out_specs=pl.BlockSpec((tm, tn), lambda j, i, k: (i, j)),
            scratch_shapes=scratch,
        ),
        compiler_params=pltpu.CompilerParams(
            dimension_semantics=("parallel", "parallel", "arbitrary")),
    )(xp, params["wmu_t"], params["wsig_t"], ein, eout,
      params["bmu"], params["bsig"])

    return out[:B, :N]


def scale_noise(key, size):
    """Factorized gaussian noise: sign(x) * sqrt(|x|), x ~ N(0, 1)."""
    x = jax.random.normal(key, (size,), dtype=jnp.float32)
    return jnp.sign(x) * jnp.sqrt(jnp.abs(x))


def init_noisy_linear(key, in_features, out_features, std_init=0.5):
    """Parameter / noise initialization mirroring the PyTorch module."""
    k_wmu, k_bmu, k_ein, k_eout = jax.random.split(key, 4)
    mu_range = 1.0 / math.sqrt(in_features)

    weight_mu = jax.random.uniform(
        k_wmu, (out_features, in_features),
        minval=-mu_range, maxval=mu_range, dtype=jnp.float32)
    weight_sigma = jnp.full((out_features, in_features),
                            std_init / math.sqrt(in_features), jnp.float32)
    bias_mu = jax.random.uniform(
        k_bmu, (out_features,),
        minval=-mu_range, maxval=mu_range, dtype=jnp.float32)
    bias_sigma = jnp.full((out_features,),
                          std_init / math.sqrt(out_features), jnp.float32)

    # TODO(synk): noise generation (reset_noise) stays host-side JAX; only the
    # forward pass is a Pallas kernel (factorized eps recombined in-kernel).
    eps_in = scale_noise(k_ein, in_features)
    eps_out = scale_noise(k_eout, out_features)

    return (weight_mu, weight_sigma, bias_mu, bias_sigma, eps_in, eps_out)


if __name__ == "__main__":
    in_features, out_features, batch = 384, 192, 12

    key = jax.random.PRNGKey(0)
    k_params, k_x = jax.random.split(key)

    (wmu, wsig, bmu, bsig, eps_in, eps_out) = init_noisy_linear(
        k_params, in_features, out_features)
    x = jax.random.normal(k_x, (batch, in_features), dtype=jnp.float32)

    # Reference (same math as F.linear with the precomputed outer-product eps).
    weps = jnp.outer(eps_out, eps_in)
    ref = x @ (wmu + wsig * weps).T + (bmu + bsig * eps_out)

    # 1) Default perf path: bf16 MXU operands (weights pre-laid-out once),
    #    adaptive tiles -> single-tile grid for these shapes.
    params_bf16 = prepare_noisy_linear_params(wmu, wsig, bmu, bsig,
                                              mxu_dtype=jnp.bfloat16)
    out_bf16 = noisy_linear(x, params_bf16, eps_in, eps_out)
    out_bf16 = jax.block_until_ready(out_bf16)
    assert out_bf16.shape == (batch, out_features)
    assert jnp.allclose(out_bf16, ref, atol=5e-2, rtol=5e-2), (
        float(jnp.max(jnp.abs(out_bf16 - ref))))

    # 2) Exact f32 path with small explicit tiles to exercise the full
    #    (out, batch, k) grid and in-place output accumulation.
    params_f32 = prepare_noisy_linear_params(wmu, wsig, bmu, bsig,
                                             mxu_dtype=jnp.float32)
    out_f32 = noisy_linear(x, params_f32, eps_in, eps_out,
                           tm=8, tn=128, tk=128)
    out_f32 = jax.block_until_ready(out_f32)
    assert out_f32.shape == (batch, out_features)
    assert jnp.allclose(out_f32, ref, atol=1e-4, rtol=1e-4), (
        float(jnp.max(jnp.abs(out_f32 - ref))))

    print("KERNEL_OK")
</pallas_src>

<mosaic_0001>
module attributes {stable_mosaic.version = 11 : i64} {
  func.func @noisy_linear_kernel(%arg0: i32, %arg1: i32, %arg2: i32, %arg3: memref<16x384xbf16, #tpu.memory_space<vmem>>, %arg4: memref<384x256xbf16, #tpu.memory_space<vmem>>, %arg5: memref<384x256xbf16, #tpu.memory_space<vmem>>, %arg6: memref<384x1xf32, #tpu.memory_space<vmem>>, %arg7: memref<1x256xf32, #tpu.memory_space<vmem>>, %arg8: memref<1x256xf32, #tpu.memory_space<vmem>>, %arg9: memref<1x256xf32, #tpu.memory_space<vmem>>, %arg10: memref<16x256xf32, #tpu.memory_space<vmem>>) attributes {dimension_semantics = [#tpu.dimension_semantics<parallel>, #tpu.dimension_semantics<parallel>, #tpu.dimension_semantics<arbitrary>], iteration_bounds = array<i64: 1, 1, 1>, scalar_prefetch = 0 : i64, scratch_operands = 0 : i64, tpu.core_type = #tpu.core_type<tc>, window_params = [{transform_indices = @transform_0, window_bounds = array<i64: 16, 384>}, {transform_indices = @transform_1, window_bounds = array<i64: 384, 256>}, {transform_indices = @transform_2, window_bounds = array<i64: 384, 256>}, {transform_indices = @transform_3, window_bounds = array<i64: 384, 1>}, {transform_indices = @transform_4, window_bounds = array<i64: 1, 256>}, {transform_indices = @transform_5, window_bounds = array<i64: 1, 256>}, {transform_indices = @transform_6, window_bounds = array<i64: 1, 256>}, {transform_indices = @transform_7, window_bounds = array<i64: 16, 256>}]} {
    %c0_i32 = arith.constant 0 : i32
    %0 = arith.cmpi eq, %arg2, %c0_i32 : i32
    %1 = arith.extui %0 : i1 to i32
    %c0_i32_0 = arith.constant 0 : i32
    %2 = arith.cmpi ne, %1, %c0_i32_0 : i32
    scf.if %2 {
      %cst_16 = arith.constant 0.000000e+00 : f32
      %23 = vector.broadcast %cst_16 : f32 to vector<16x256xf32>
      %c0_17 = arith.constant 0 : index
      %c0_18 = arith.constant 0 : index
      %24 = vector.load %arg10[%c0_17, %c0_18] : memref<16x256xf32, #tpu.memory_space<vmem>>, vector<16x256xf32>
      tpu.vector_store %arg10[%c0_17, %c0_18], %23 {strides = array<i32>} : memref<16x256xf32, #tpu.memory_space<vmem>>, vector<16x256xf32>,
    } else {
    }
    %c0 = arith.constant 0 : index
    %c0_1 = arith.constant 0 : index
    %3 = vector.load %arg6[%c0, %c0_1] : memref<384x1xf32, #tpu.memory_space<vmem>>, vector<384x1xf32>
    %c0_2 = arith.constant 0 : index
    %c0_3 = arith.constant 0 : index
    %4 = vector.load %arg7[%c0_2, %c0_3] : memref<1x256xf32, #tpu.memory_space<vmem>>, vector<1x256xf32>
    %5 = vector.broadcast %3 : vector<384x1xf32> to vector<384x256xf32>
    %6 = vector.broadcast %4 : vector<1x256xf32> to vector<384x256xf32>
    %7 = arith.mulf %5, %6 : vector<384x256xf32>
    %c0_4 = arith.constant 0 : index
    %c0_5 = arith.constant 0 : index
    %8 = vector.load %arg4[%c0_4, %c0_5] : memref<384x256xbf16, #tpu.memory_space<vmem>>, vector<384x256xbf16>
    %c0_6 = arith.constant 0 : index
    %c0_7 = arith.constant 0 : index
    %9 = vector.load %arg5[%c0_6, %c0_7] : memref<384x256xbf16, #tpu.memory_space<vmem>>, vector<384x256xbf16>
    %10 = arith.extf %8 : vector<384x256xbf16> to vector<384x256xf32>
    %11 = arith.extf %9 : vector<384x256xbf16> to vector<384x256xf32>
    %12 = arith.mulf %11, %7 : vector<384x256xf32>
    %13 = arith.addf %10, %12 : vector<384x256xf32>
    %14 = arith.truncf %13 : vector<384x256xf32> to vector<384x256xbf16>
    %c0_8 = arith.constant 0 : index
    %c0_9 = arith.constant 0 : index
    %15 = vector.load %arg3[%c0_8, %c0_9] : memref<16x384xbf16, #tpu.memory_space<vmem>>, vector<16x384xbf16>
    %c0_10 = arith.constant 0 : index
    %c0_11 = arith.constant 0 : index
    %16 = vector.load %arg10[%c0_10, %c0_11] : memref<16x256xf32, #tpu.memory_space<vmem>>, vector<16x256xf32>
    %cst = arith.constant dense<0.000000e+00> : vector<16x256xf32>
    %17 = tpu.matmul %15, %14, %cst {dimension_numbers = #tpu.dot_dimension_numbers<[1], [0], [0], [1], [0, 0, 1, 1], [], []>} : vector<16x384xbf16>, vector<384x256xbf16>, vector<16x256xf32> -> vector<16x256xf32>
    %18 = arith.addf %16, %17 : vector<16x256xf32>
    %c0_12 = arith.constant 0 : index
    %c0_13 = arith.constant 0 : index
    %19 = vector.load %arg10[%c0_12, %c0_13] : memref<16x256xf32, #tpu.memory_space<vmem>>, vector<16x256xf32>
    tpu.vector_store %arg10[%c0_12, %c0_13], %18 {strides = array<i32>} : memref<16x256xf32, #tpu.memory_space<vmem>>, vector<16x256xf32>,
    %c0_i32_14 = arith.constant 0 : i32
    %20 = arith.cmpi eq, %arg2, %c0_i32_14 : i32
    %21 = arith.extui %20 : i1 to i32
    %c0_i32_15 = arith.constant 0 : i32
    %22 = arith.cmpi ne, %21, %c0_i32_15 : i32
    scf.if %22 {
      %c0_16 = arith.constant 0 : index
      %c0_17 = arith.constant 0 : index
      %23 = vector.load %arg8[%c0_16, %c0_17] : memref<1x256xf32, #tpu.memory_space<vmem>>, vector<1x256xf32>
      %c0_18 = arith.constant 0 : index
      %c0_19 = arith.constant 0 : index
      %24 = vector.load %arg9[%c0_18, %c0_19] : memref<1x256xf32, #tpu.memory_space<vmem>>, vector<1x256xf32>
      %c0_20 = arith.constant 0 : index
      %c0_21 = arith.constant 0 : index
      %25 = vector.load %arg7[%c0_20, %c0_21] : memref<1x256xf32, #tpu.memory_space<vmem>>, vector<1x256xf32>
      %26 = arith.mulf %24, %25 : vector<1x256xf32>
      %27 = arith.addf %23, %26 : vector<1x256xf32>
      %c0_22 = arith.constant 0 : index
      %c0_23 = arith.constant 0 : index
      %28 = vector.load %arg10[%c0_22, %c0_23] : memref<16x256xf32, #tpu.memory_space<vmem>>, vector<16x256xf32>
      %29 = vector.broadcast %27 : vector<1x256xf32> to vector<16x256xf32>
      %30 = arith.addf %28, %29 : vector<16x256xf32>
      %c0_24 = arith.constant 0 : index
      %c0_25 = arith.constant 0 : index
      %31 = vector.load %arg10[%c0_24, %c0_25] : memref<16x256xf32, #tpu.memory_space<vmem>>, vector<16x256xf32>
      tpu.vector_store %arg10[%c0_24, %c0_25], %30 {strides = array<i32>} : memref<16x256xf32, #tpu.memory_space<vmem>>, vector<16x256xf32>,
    } else {
    }
    return
  }
  func.func @transform_0(%arg0: i32, %arg1: i32, %arg2: i32) -> (i32, i32) {
    %c0_i32 = arith.constant 0 : i32
    return %arg1, %arg2 : i32, i32
  }
  func.func @transform_1(%arg0: i32, %arg1: i32, %arg2: i32) -> (i32, i32) {
    %c0_i32 = arith.constant 0 : i32
    return %arg2, %arg0 : i32, i32
  }
  func.func @transform_2(%arg0: i32, %arg1: i32, %arg2: i32) -> (i32, i32) {
    %c0_i32 = arith.constant 0 : i32
    return %arg2, %arg0 : i32, i32
  }
  func.func @transform_3(%arg0: i32, %arg1: i32, %arg2: i32) -> (i32, i32) {
    %c0_i32 = arith.constant 0 : i32
    %c0_i32_0 = arith.constant 0 : i32
    return %arg2, %c0_i32 : i32, i32
  }
  func.func @transform_4(%arg0: i32, %arg1: i32, %arg2: i32) -> (i32, i32) {
    %c0_i32 = arith.constant 0 : i32
    %c0_i32_0 = arith.constant 0 : i32
    return %c0_i32, %arg0 : i32, i32
  }
  func.func @transform_5(%arg0: i32, %arg1: i32, %arg2: i32) -> (i32, i32) {
    %c0_i32 = arith.constant 0 : i32
    %c0_i32_0 = arith.constant 0 : i32
    return %c0_i32, %arg0 : i32, i32
  }
  func.func @transform_6(%arg0: i32, %arg1: i32, %arg2: i32) -> (i32, i32) {
    %c0_i32 = arith.constant 0 : i32
    %c0_i32_0 = arith.constant 0 : i32
    return %c0_i32, %arg0 : i32, i32
  }
  func.func @transform_7(%arg0: i32, %arg1: i32, %arg2: i32) -> (i32, i32) {
    %c0_i32 = arith.constant 0 : i32
    return %arg1, %arg0 : i32, i32
  }
}

</mosaic_0001>

<llo_original>
// kernel: tpu_custom_call.1
$region0: #{tpu_custom_call.1}
  #allocation0 [shape = 'u32[]', space=smem, size = 0x4, offset = 0x4, fixed_abs, tag = 'smem constant byte address 0x4 - core index']
  #allocation1 [shape = 'u32[144,128]{1,0:T(1,128)}', space=vmem, size = 0x12000, scoped, tag = 'internal scratch']
  %s0 = inlined_call_operand.hbm [shape: bf16[16,384], index: 0, kind: input, shape index: {}]
  %s1 = inlined_call_operand.vmem [shape: bf16[384,256], index: 1, kind: input, shape index: {}]
  %s2 = inlined_call_operand.hbm [shape: bf16[384,256], index: 2, kind: input, shape index: {}]
  %s3 = inlined_call_operand.vmem [shape: f32[384,1], index: 3, kind: input, shape index: {}]
  %s4 = inlined_call_operand.vmem [shape: f32[1,256], index: 4, kind: input, shape index: {}]
  %s5 = inlined_call_operand.vmem [shape: f32[1,256], index: 5, kind: input, shape index: {}]
  %s6 = inlined_call_operand.vmem [shape: f32[1,256], index: 6, kind: input, shape index: {}]
  %s7 = inlined_call_operand.hbm [shape: f32[16,256], index: 7, kind: output, shape index: {}]
  %s8 = sld [smem:[#allocation0]]
  $region54: #{tpu_custom_call.1} parent=0
    _
  %s10 = ssub.s32 1, %s8
  %s11 = scalar_select 0, %s10, %s8
  $region1: #{tpu_custom_call.1} parent=0
    #allocation2 [shape = 'u8[12288]{0}', space=vmem, size = 0x3000, scoped, tag = 'input window, operand 0, single buffered']
    #allocation3 [shape = 's32[1]{0}', space=sflag, size = 0x4, scoped, tag = 'scoped memory for tpu_custom_call.1']
    #allocation4 [shape = 's32[1]{0}', space=sflag, size = 0x4, scoped, tag = 'scoped memory for tpu_custom_call.1']
    #allocation5 [shape = 'u8[196608]{0}', space=vmem, size = 0x30000, scoped, tag = 'input window, operand 2, single buffered']
    #allocation6 [shape = 's32[1]{0}', space=sflag, size = 0x4, scoped, tag = 'scoped memory for tpu_custom_call.1']
    #allocation7 [shape = 'u8[16384]{0}', space=vmem, size = 0x4000, scoped, tag = 'output window, operand 0, single buffered']
    %12 = vsyncpa [#allocation3], 0
    %13 = vsyncpa [#allocation6], 0
    %14 = vsyncpa [#allocation4], 0
    // Predicated region
    $region2: #{tpu_custom_call.1} parent=1 // pred_check
      _
    $region3: #{tpu_custom_call.1} parent=1 // pred_check_branch
      %16 = sbr.rel (0) target = $region5
    $region4: #{tpu_custom_call.1} parent=1 // pred_region
      %s18 = ssub.s32 384, 384
      %19 = vsyncadd [#allocation3], %s18
      %s20 = sshll.u32 [#allocation2], 4
      %s21 = int_to_ptr.vmem [resolvable:$true] %s20
      %26 = dma.hbm_to_vmem [thread:$0]  %s0, 384, %s21, [#allocation3], 192, 192, 12
    $region5: #{tpu_custom_call.1} parent=1 // pred_fallthru
      _
    // Predicated region
    $region6: #{tpu_custom_call.1} parent=1 // pred_check
      _
    $region7: #{tpu_custom_call.1} parent=1 // pred_check_branch
      %28 = sbr.rel (0) target = $region9
    $region8: #{tpu_custom_call.1} parent=1 // pred_region
      _
    $region9: #{tpu_custom_call.1} parent=1 // pred_fallthru
      _
    // Predicated region
    $region10: #{tpu_custom_call.1} parent=1 // pred_check
      _
    $region11: #{tpu_custom_call.1} parent=1 // pred_check_branch
      %30 = sbr.rel (0) target = $region13
    $region12: #{tpu_custom_call.1} parent=1 // pred_region
      %s32 = ssub.s32 6144, 6144
      %33 = vsyncadd [#allocation6], %s32
      %s34 = sshll.u32 [#allocation5], 4
      %s35 = int_to_ptr.vmem [resolvable:$true] %s34
      %40 = dma.hbm_to_vmem [thread:$0]  %s2, 6144, %s35, [#allocation6], 128, 128, 8
    $region13: #{tpu_custom_call.1} parent=1 // pred_fallthru
      _
    // Predicated region
    $region14: #{tpu_custom_call.1} parent=1 // pred_check
      _
    $region15: #{tpu_custom_call.1} parent=1 // pred_check_branch
      %42 = sbr.rel (0) target = $region17
    $region16: #{tpu_custom_call.1} parent=1 // pred_region
      _
    $region17: #{tpu_custom_call.1} parent=1 // pred_fallthru
      _
    // Predicated region
    $region18: #{tpu_custom_call.1} parent=1 // pred_check
      _
    $region19: #{tpu_custom_call.1} parent=1 // pred_check_branch
      %44 = sbr.rel (0) target = $region21
    $region20: #{tpu_custom_call.1} parent=1 // pred_region
      _
    $region21: #{tpu_custom_call.1} parent=1 // pred_fallthru
      _
    // Predicated region
    $region22: #{tpu_custom_call.1} parent=1 // pred_check
      _
    $region23: #{tpu_custom_call.1} parent=1 // pred_check_branch
      %46 = sbr.rel (0) target = $region25
    $region24: #{tpu_custom_call.1} parent=1 // pred_region
      _
    $region25: #{tpu_custom_call.1} parent=1 // pred_fallthru
      _
    // Predicated region
    $region26: #{tpu_custom_call.1} parent=1 // pred_check
      _
    $region27: #{tpu_custom_call.1} parent=1 // pred_check_branch
      %48 = sbr.rel (0) target = $region29
    $region28: #{tpu_custom_call.1} parent=1 // pred_region
      _
    $region29: #{tpu_custom_call.1} parent=1 // pred_fallthru
      _
    // Predicated region
    $region30: #{tpu_custom_call.1} parent=1 // pred_check
      _
    $region31: #{tpu_custom_call.1} parent=1 // pred_check_branch
      %50 = sbr.rel (0) target = $region33
    $region32: #{tpu_custom_call.1} parent=1 // pred_region
      %51 = dma.done [#allocation3], 384
    $region33: #{tpu_custom_call.1} parent=1 // pred_fallthru
      _
    // Predicated region
    $region34: #{tpu_custom_call.1} parent=1 // pred_check
      _
    $region35: #{tpu_custom_call.1} parent=1 // pred_check_branch
      %53 = sbr.rel (0) target = $region37
    $region36: #{tpu_custom_call.1} parent=1 // pred_region
      %54 = dma.done [#allocation6], 6144
    $region37: #{tpu_custom_call.1} parent=1 // pred_fallthru
      _
    %p56 = scmp.eq.s32.totalorder 0, 0
    // Predicated region
    $region38: #{tpu_custom_call.1} parent=1 // pred_check
      %p57 = pneg %p56
    $region39: #{tpu_custom_call.1} parent=1 // pred_check_branch
      %59 = sbr.rel (%p57) target = $region41
    $region40: #{tpu_custom_call.1} parent=1 // pred_region
      %60 = vst [vmem:[#allocation7] sm:$0xff] 0.0
      %61 = vst [vmem:[#allocation7 + $0x8] sm:$0xff] 0.0
      %62 = vst [vmem:[#allocation7 + $0x10] sm:$0xff] 0.0
      %63 = vst [vmem:[#allocation7 + $0x18] sm:$0xff] 0.0
    $region41: #{tpu_custom_call.1} parent=1 // pred_fallthru
      _
    %v64 = vld [vmem:[%s3] sm:$0xff]
    %v65 = vld [vmem:[%s3 + $0x8] sm:$0xff]
    %v66 = vld [vmem:[%s3 + $0x10] sm:$0xff]
    %v67 = vld [vmem:[%s3 + $0x18] sm:$0xff]
    %v68 = vld [vmem:[%s3 + $0x20] sm:$0xff]
    %v69 = vld [vmem:[%s3 + $0x28] sm:$0xff]
    %v70 = vld [vmem:[%s3 + $0x30] sm:$0xff]
    %v71 = vld [vmem:[%s3 + $0x38] sm:$0xff]
    %v72 = vld [vmem:[%s3 + $0x40] sm:$0xff]
    %v73 = vld [vmem:[%s3 + $0x48] sm:$0xff]
    %v74 = vld [vmem:[%s3 + $0x50] sm:$0xff]
    %v75 = vld [vmem:[%s3 + $0x58] sm:$0xff]
    %v76 = vld [vmem:[%s3 + $0x60] sm:$0xff]
    %v77 = vld [vmem:[%s3 + $0x68] sm:$0xff]
    %v78 = vld [vmem:[%s3 + $0x70] sm:$0xff]
    %v79 = vld [vmem:[%s3 + $0x78] sm:$0xff]
    %v80 = vld [vmem:[%s3 + $0x80] sm:$0xff]
    %v81 = vld [vmem:[%s3 + $0x88] sm:$0xff]
    %v82 = vld [vmem:[%s3 + $0x90] sm:$0xff]
    %v83 = vld [vmem:[%s3 + $0x98] sm:$0xff]
    %v84 = vld [vmem:[%s3 + $0xa0] sm:$0xff]
    %v85 = vld [vmem:[%s3 + $0xa8] sm:$0xff]
    %v86 = vld [vmem:[%s3 + $0xb0] sm:$0xff]
    %v87 = vld [vmem:[%s3 + $0xb8] sm:$0xff]
    %v88 = vld [vmem:[%s3 + $0xc0] sm:$0xff]
    %v89 = vld [vmem:[%s3 + $0xc8] sm:$0xff]
    %v90 = vld [vmem:[%s3 + $0xd0] sm:$0xff]
    %v91 = vld [vmem:[%s3 + $0xd8] sm:$0xff]
    %v92 = vld [vmem:[%s3 + $0xe0] sm:$0xff]
    %v93 = vld [vmem:[%s3 + $0xe8] sm:$0xff]
    %v94 = vld [vmem:[%s3 + $0xf0] sm:$0xff]
    %v95 = vld [vmem:[%s3 + $0xf8] sm:$0xff]
    %v96 = vld [vmem:[%s3 + $0x100] sm:$0xff]
    %v97 = vld [vmem:[%s3 + $0x108] sm:$0xff]
    %v98 = vld [vmem:[%s3 + $0x110] sm:$0xff]
    %v99 = vld [vmem:[%s3 + $0x118] sm:$0xff]
    %v100 = vld [vmem:[%s3 + $0x120] sm:$0xff]
    %v101 = vld [vmem:[%s3 + $0x128] sm:$0xff]
    %v102 = vld [vmem:[%s3 + $0x130] sm:$0xff]
    %v103 = vld [vmem:[%s3 + $0x138] sm:$0xff]
    %v104 = vld [vmem:[%s3 + $0x140] sm:$0xff]
    %v105 = vld [vmem:[%s3 + $0x148] sm:$0xff]
    %v106 = vld [vmem:[%s3 + $0x150] sm:$0xff]
    %v107 = vld [vmem:[%s3 + $0x158] sm:$0xff]
    %v108 = vld [vmem:[%s3 + $0x160] sm:$0xff]
    %v109 = vld [vmem:[%s3 + $0x168] sm:$0xff]
    %v110 = vld [vmem:[%s3 + $0x170] sm:$0xff]
    %v111 = vld [vmem:[%s3 + $0x178] sm:$0xff]
    %v112 = vld [vmem:[%s4] sm:$0x3]
    %114 = vset.pattern.permute.xlu0 0
    %115 = vperm.xlu0 %114, %v64
    %v116 = vpop.permute.xlu0 %115
    %119 = vset.pattern.permute.xlu0 0
    %120 = vperm.xlu0 %119, %v65
    %v121 = vpop.permute.xlu0 %120
    %124 = vset.pattern.permute.xlu0 0
    %125 = vperm.xlu0 %124, %v66
    %v126 = vpop.permute.xlu0 %125
    %129 = vset.pattern.permute.xlu0 0
    %130 = vperm.xlu0 %129, %v67
    %v131 = vpop.permute.xlu0 %130
    %134 = vset.pattern.permute.xlu0 0
    %135 = vperm.xlu0 %134, %v68
    %v136 = vpop.permute.xlu0 %135
    %139 = vset.pattern.permute.xlu0 0
    %140 = vperm.xlu0 %139, %v69
    %v141 = vpop.permute.xlu0 %140
    %144 = vset.pattern.permute.xlu0 0
    %145 = vperm.xlu0 %144, %v70
    %v146 = vpop.permute.xlu0 %145
    %149 = vset.pattern.permute.xlu0 0
    %150 = vperm.xlu0 %149, %v71
    %v151 = vpop.permute.xlu0 %150
    %154 = vset.pattern.permute.xlu0 0
    %155 = vperm.xlu0 %154, %v72
    %v156 = vpop.permute.xlu0 %155
    %159 = vset.pattern.permute.xlu0 0
    %160 = vperm.xlu0 %159, %v73
    %v161 = vpop.permute.xlu0 %160
    %164 = vset.pattern.permute.xlu0 0
    %165 = vperm.xlu0 %164, %v74
    %v166 = vpop.permute.xlu0 %165
    %169 = vset.pattern.permute.xlu0 0
    %170 = vperm.xlu0 %169, %v75
    %v171 = vpop.permute.xlu0 %170
    %174 = vset.pattern.permute.xlu0 0
    %175 = vperm.xlu0 %174, %v76
    %v176 = vpop.permute.xlu0 %175
    %179 = vset.pattern.permute.xlu0 0
    %180 = vperm.xlu0 %179, %v77
    %v181 = vpop.permute.xlu0 %180
    %184 = vset.pattern.permute.xlu0 0
    %185 = vperm.xlu0 %184, %v78
    %v186 = vpop.permute.xlu0 %185
    %189 = vset.pattern.permute.xlu0 0
    %190 = vperm.xlu0 %189, %v79
    %v191 = vpop.permute.xlu0 %190
    %194 = vset.pattern.permute.xlu0 0
    %195 = vperm.xlu0 %194, %v80
    %v196 = vpop.permute.xlu0 %195
    %199 = vset.pattern.permute.xlu0 0
    %200 = vperm.xlu0 %199, %v81
    %v201 = vpop.permute.xlu0 %200
    %204 = vset.pattern.permute.xlu0 0
    %205 = vperm.xlu0 %204, %v82
    %v206 = vpop.permute.xlu0 %205
    %209 = vset.pattern.permute.xlu0 0
    %210 = vperm.xlu0 %209, %v83
    %v211 = vpop.permute.xlu0 %210
    %214 = vset.pattern.permute.xlu0 0
    %215 = vperm.xlu0 %214, %v84
    %v216 = vpop.permute.xlu0 %215
    %219 = vset.pattern.permute.xlu0 0
    %220 = vperm.xlu0 %219, %v85
    %v221 = vpop.permute.xlu0 %220
    %224 = vset.pattern.permute.xlu0 0
    %225 = vperm.xlu0 %224, %v86
    %v226 = vpop.permute.xlu0 %225
    %229 = vset.pattern.permute.xlu0 0
    %230 = vperm.xlu0 %229, %v87
    %v231 = vpop.permute.xlu0 %230
    %234 = vset.pattern.permute.xlu0 0
    %235 = vperm.xlu0 %234, %v88
    %v236 = vpop.permute.xlu0 %235
    %239 = vset.pattern.permute.xlu0 0
    %240 = vperm.xlu0 %239, %v89
    %v241 = vpop.permute.xlu0 %240
    %244 = vset.pattern.permute.xlu0 0
    %245 = vperm.xlu0 %244, %v90
    %v246 = vpop.permute.xlu0 %245
    %249 = vset.pattern.permute.xlu0 0
    %250 = vperm.xlu0 %249, %v91
    %v251 = vpop.permute.xlu0 %250
    %254 = vset.pattern.permute.xlu0 0
    %255 = vperm.xlu0 %254, %v92
    %v256 = vpop.permute.xlu0 %255
    %259 = vset.pattern.permute.xlu0 0
    %260 = vperm.xlu0 %259, %v93
    %v261 = vpop.permute.xlu0 %260
    %264 = vset.pattern.permute.xlu0 0
    %265 = vperm.xlu0 %264, %v94
    %v266 = vpop.permute.xlu0 %265
    %269 = vset.pattern.permute.xlu0 0
    %270 = vperm.xlu0 %269, %v95
    %v271 = vpop.permute.xlu0 %270
    %274 = vset.pattern.permute.xlu0 0
    %275 = vperm.xlu0 %274, %v96
    %v276 = vpop.permute.xlu0 %275
    %279 = vset.pattern.permute.xlu0 0
    %280 = vperm.xlu0 %279, %v97
    %v281 = vpop.permute.xlu0 %280
    %284 = vset.pattern.permute.xlu0 0
    %285 = vperm.xlu0 %284, %v98
    %v286 = vpop.permute.xlu0 %285
    %289 = vset.pattern.permute.xlu0 0
    %290 = vperm.xlu0 %289, %v99
    %v291 = vpop.permute.xlu0 %290
    %294 = vset.pattern.permute.xlu0 0
    %295 = vperm.xlu0 %294, %v100
    %v296 = vpop.permute.xlu0 %295
    %299 = vset.pattern.permute.xlu0 0
    %300 = vperm.xlu0 %299, %v101
    %v301 = vpop.permute.xlu0 %300
    %304 = vset.pattern.permute.xlu0 0
    %305 = vperm.xlu0 %304, %v102
    %v306 = vpop.permute.xlu0 %305
    %309 = vset.pattern.permute.xlu0 0
    %310 = vperm.xlu0 %309, %v103
    %v311 = vpop.permute.xlu0 %310
    %314 = vset.pattern.permute.xlu0 0
    %315 = vperm.xlu0 %314, %v104
    %v316 = vpop.permute.xlu0 %315
    %319 = vset.pattern.permute.xlu0 0
    %320 = vperm.xlu0 %319, %v105
    %v321 = vpop.permute.xlu0 %320
    %324 = vset.pattern.permute.xlu0 0
    %325 = vperm.xlu0 %324, %v106
    %v326 = vpop.permute.xlu0 %325
    %329 = vset.pattern.permute.xlu0 0
    %330 = vperm.xlu0 %329, %v107
    %v331 = vpop.permute.xlu0 %330
    %334 = vset.pattern.permute.xlu0 0
    %335 = vperm.xlu0 %334, %v108
    %v336 = vpop.permute.xlu0 %335
    %339 = vset.pattern.permute.xlu0 0
    %340 = vperm.xlu0 %339, %v109
    %v341 = vpop.permute.xlu0 %340
    %344 = vset.pattern.permute.xlu0 0
    %345 = vperm.xlu0 %344, %v110
    %v346 = vpop.permute.xlu0 %345
    %349 = vset.pattern.permute.xlu0 0
    %350 = vperm.xlu0 %349, %v111
    %v351 = vpop.permute.xlu0 %350
    %v354 = vlaneseq
    %v355 = vshrl.u32 %v354, 7
    %v356 = vsub.s32 0, %v355
    %v357 = vrot.slane %v112, %v356
    %v358 = vlaneseq
    %v359 = vshrl.u32 %v358, 7
    %v360 = vsub.s32 1, %v359
    %v361 = vrot.slane %v112, %v360
    %v364 = vmul.f32 %v116, %v357
    %v365 = vmul.f32 %v116, %v361
    %v366 = vmul.f32 %v121, %v357
    %v367 = vmul.f32 %v121, %v361
    %v368 = vmul.f32 %v126, %v357
    %v369 = vmul.f32 %v126, %v361
    %v370 = vmul.f32 %v131, %v357
    %v371 = vmul.f32 %v131, %v361
    %v372 = vmul.f32 %v136, %v357
    %v373 = vmul.f32 %v136, %v361
    %v374 = vmul.f32 %v141, %v357
    %v375 = vmul.f32 %v141, %v361
    %v376 = vmul.f32 %v146, %v357
    %v377 = vmul.f32 %v146, %v361
    %v378 = vmul.f32 %v151, %v357
    %v379 = vmul.f32 %v151, %v361
    %v380 = vmul.f32 %v156, %v357
    %v381 = vmul.f32 %v156, %v361
    %v382 = vmul.f32 %v161, %v357
    %v383 = vmul.f32 %v161, %v361
    %v384 = vmul.f32 %v166, %v357
    %v385 = vmul.f32 %v166, %v361
    %v386 = vmul.f32 %v171, %v357
    %v387 = vmul.f32 %v171, %v361
    %v388 = vmul.f32 %v176, %v357
    %v389 = vmul.f32 %v176, %v361
    %v390 = vmul.f32 %v181, %v357
    %v391 = vmul.f32 %v181, %v361
    %v392 = vmul.f32 %v186, %v357
    %v393 = vmul.f32 %v186, %v361
    %v394 = vmul.f32 %v191, %v357
    %v395 = vmul.f32 %v191, %v361
    %v396 = vmul.f32 %v196, %v357
    %v397 = vmul.f32 %v196, %v361
    %v398 = vmul.f32 %v201, %v357
    %v399 = vmul.f32 %v201, %v361
    %v400 = vmul.f32 %v206, %v357
    %v401 = vmul.f32 %v206, %v361
    %v402 = vmul.f32 %v211, %v357
    %v403 = vmul.f32 %v211, %v361
    %v404 = vmul.f32 %v216, %v357
    %v405 = vmul.f32 %v216, %v361
    %v406 = vmul.f32 %v221, %v357
    %v407 = vmul.f32 %v221, %v361
    %v408 = vmul.f32 %v226, %v357
    %v409 = vmul.f32 %v226, %v361
    %v410 = vmul.f32 %v231, %v357
    %v411 = vmul.f32 %v231, %v361
    %v412 = vmul.f32 %v236, %v357
    %v413 = vmul.f32 %v236, %v361
    %v414 = vmul.f32 %v241, %v357
    %v415 = vmul.f32 %v241, %v361
    %v416 = vmul.f32 %v246, %v357
    %v417 = vmul.f32 %v246, %v361
    %v418 = vmul.f32 %v251, %v357
    %v419 = vmul.f32 %v251, %v361
    %v420 = vmul.f32 %v256, %v357
    %v421 = vmul.f32 %v256, %v361
    %v422 = vmul.f32 %v261, %v357
    %v423 = vmul.f32 %v261, %v361
    %v424 = vmul.f32 %v266, %v357
    %v425 = vmul.f32 %v266, %v361
    %v426 = vmul.f32 %v271, %v357
    %v427 = vmul.f32 %v271, %v361
    %v428 = vmul.f32 %v276, %v357
    %v429 = vmul.f32 %v276, %v361
    %v430 = vmul.f32 %v281, %v357
    %v431 = vmul.f32 %v281, %v361
    %v432 = vmul.f32 %v286, %v357
    %v433 = vmul.f32 %v286, %v361
    %v434 = vmul.f32 %v291, %v357
    %v435 = vmul.f32 %v291, %v361
    %v436 = vmul.f32 %v296, %v357
    %v437 = vmul.f32 %v296, %v361
    %v438 = vmul.f32 %v301, %v357
    %v439 = vmul.f32 %v301, %v361
    %v440 = vmul.f32 %v306, %v357
    %v441 = vmul.f32 %v306, %v361
    %v442 = vmul.f32 %v311, %v357
    %v443 = vmul.f32 %v311, %v361
    %v444 = vmul.f32 %v316, %v357
    %v445 = vmul.f32 %v316, %v361
    %v446 = vmul.f32 %v321, %v357
    %v447 = vmul.f32 %v321, %v361
    %v448 = vmul.f32 %v326, %v357
    %v449 = vmul.f32 %v326, %v361
    %v450 = vmul.f32 %v331, %v357
    %v451 = vmul.f32 %v331, %v361
    %v452 = vmul.f32 %v336, %v357
    %v453 = vmul.f32 %v336, %v361
    %v454 = vmul.f32 %v341, %v357
    %v455 = vmul.f32 %v341, %v361
    %v456 = vmul.f32 %v346, %v357
    %v457 = vmul.f32 %v346, %v361
    %v458 = vmul.f32 %v351, %v357
    %v459 = vmul.f32 %v351, %v361
    %v460 = vld [vmem:[%s1] sm:$0xff]
    %v461 = vld [vmem:[%s1 + $0x8] sm:$0xff]
    %v462 = vld [vmem:[%s1 + $0x10] sm:$0xff]
    %v463 = vld [vmem:[%s1 + $0x18] sm:$0xff]
    %v464 = vld [vmem:[%s1 + $0x20] sm:$0xff]
    %v465 = vld [vmem:[%s1 + $0x28] sm:$0xff]
    %v466 = vld [vmem:[%s1 + $0x30] sm:$0xff]
    %v467 = vld [vmem:[%s1 + $0x38] sm:$0xff]
    %v468 = vld [vmem:[%s1 + $0x40] sm:$0xff]
    %v469 = vld [vmem:[%s1 + $0x48] sm:$0xff]
    %v470 = vld [vmem:[%s1 + $0x50] sm:$0xff]
    %v471 = vld [vmem:[%s1 + $0x58] sm:$0xff]
    %v472 = vld [vmem:[%s1 + $0x60] sm:$0xff]
    %v473 = vld [vmem:[%s1 + $0x68] sm:$0xff]
    %v474 = vld [vmem:[%s1 + $0x70] sm:$0xff]
    %v475 = vld [vmem:[%s1 + $0x78] sm:$0xff]
    %v476 = vld [vmem:[%s1 + $0x80] sm:$0xff]
    %v477 = vld [vmem:[%s1 + $0x88] sm:$0xff]
    %v478 = vld [vmem:[%s1 + $0x90] sm:$0xff]
    %v479 = vld [vmem:[%s1 + $0x98] sm:$0xff]
    %v480 = vld [vmem:[%s1 + $0xa0] sm:$0xff]
    %v481 = vld [vmem:[%s1 + $0xa8] sm:$0xff]
    %v482 = vld [vmem:[%s1 + $0xb0] sm:$0xff]
    %v483 = vld [vmem:[%s1 + $0xb8] sm:$0xff]
    %v484 = vld [vmem:[%s1 + $0xc0] sm:$0xff]
    %v485 = vld [vmem:[%s1 + $0xc8] sm:$0xff]
    %v486 = vld [vmem:[%s1 + $0xd0] sm:$0xff]
    %v487 = vld [vmem:[%s1 + $0xd8] sm:$0xff]
    %v488 = vld [vmem:[%s1 + $0xe0] sm:$0xff]
    %v489 = vld [vmem:[%s1 + $0xe8] sm:$0xff]
    %v490 = vld [vmem:[%s1 + $0xf0] sm:$0xff]
    %v491 = vld [vmem:[%s1 + $0xf8] sm:$0xff]
    %v492 = vld [vmem:[%s1 + $0x100] sm:$0xff]
    %v493 = vld [vmem:[%s1 + $0x108] sm:$0xff]
    %v494 = vld [vmem:[%s1 + $0x110] sm:$0xff]
    %v495 = vld [vmem:[%s1 + $0x118] sm:$0xff]
    %v496 = vld [vmem:[%s1 + $0x120] sm:$0xff]
    %v497 = vld [vmem:[%s1 + $0x128] sm:$0xff]
    %v498 = vld [vmem:[%s1 + $0x130] sm:$0xff]
    %v499 = vld [vmem:[%s1 + $0x138] sm:$0xff]
    %v500 = vld [vmem:[%s1 + $0x140] sm:$0xff]
    %v501 = vld [vmem:[%s1 + $0x148] sm:$0xff]
    %v502 = vld [vmem:[%s1 + $0x150] sm:$0xff]
    %v503 = vld [vmem:[%s1 + $0x158] sm:$0xff]
    %v504 = vld [vmem:[%s1 + $0x160] sm:$0xff]
    %v505 = vld [vmem:[%s1 + $0x168] sm:$0xff]
    %v506 = vld [vmem:[%s1 + $0x170] sm:$0xff]
    %v507 = vld [vmem:[%s1 + $0x178] sm:$0xff]
    %v508 = vld [vmem:[#allocation5] sm:$0xff]
    %v509 = vld [vmem:[#allocation5 + $0x8] sm:$0xff]
    %v510 = vld [vmem:[#allocation5 + $0x10] sm:$0xff]
    %v511 = vld [vmem:[#allocation5 + $0x18] sm:$0xff]
    %v512 = vld [vmem:[#allocation5 + $0x20] sm:$0xff]
    %v513 = vld [vmem:[#allocation5 + $0x28] sm:$0xff]
    %v514 = vld [vmem:[#allocation5 + $0x30] sm:$0xff]
    %v515 = vld [vmem:[#allocation5 + $0x38] sm:$0xff]
    %v516 = vld [vmem:[#allocation5 + $0x40] sm:$0xff]
    %v517 = vld [vmem:[#allocation5 + $0x48] sm:$0xff]
    %v518 = vld [vmem:[#allocation5 + $0x50] sm:$0xff]
    %v519 = vld [vmem:[#allocation5 + $0x58] sm:$0xff]
    %v520 = vld [vmem:[#allocation5 + $0x60] sm:$0xff]
    %v521 = vld [vmem:[#allocation5 + $0x68] sm:$0xff]
    %v522 = vld [vmem:[#allocation5 + $0x70] sm:$0xff]
    %v523 = vld [vmem:[#allocation5 + $0x78] sm:$0xff]
    %v524 = vld [vmem:[#allocation5 + $0x80] sm:$0xff]
    %v525 = vld [vmem:[#allocation5 + $0x88] sm:$0xff]
    %v526 = vld [vmem:[#allocation5 + $0x90] sm:$0xff]
    %v527 = vld [vmem:[#allocation5 + $0x98] sm:$0xff]
    %v528 = vld [vmem:[#allocation5 + $0xa0] sm:$0xff]
    %v529 = vld [vmem:[#allocation5 + $0xa8] sm:$0xff]
    %v530 = vld [vmem:[#allocation5 + $0xb0] sm:$0xff]
    %v531 = vld [vmem:[#allocation5 + $0xb8] sm:$0xff]
    %v532 = vld [vmem:[#allocation5 + $0xc0] sm:$0xff]
    %v533 = vld [vmem:[#allocation5 + $0xc8] sm:$0xff]
    %v534 = vld [vmem:[#allocation5 + $0xd0] sm:$0xff]
    %v535 = vld [vmem:[#allocation5 + $0xd8] sm:$0xff]
    %v536 = vld [vmem:[#allocation5 + $0xe0] sm:$0xff]
    %v537 = vld [vmem:[#allocation5 + $0xe8] sm:$0xff]
    %v538 = vld [vmem:[#allocation5 + $0xf0] sm:$0xff]
    %v539 = vld [vmem:[#allocation5 + $0xf8] sm:$0xff]
    %v540 = vld [vmem:[#allocation5 + $0x100] sm:$0xff]
    %v541 = vld [vmem:[#allocation5 + $0x108] sm:$0xff]
    %v542 = vld [vmem:[#allocation5 + $0x110] sm:$0xff]
    %v543 = vld [vmem:[#allocation5 + $0x118] sm:$0xff]
    %v544 = vld [vmem:[#allocation5 + $0x120] sm:$0xff]
    %v545 = vld [vmem:[#allocation5 + $0x128] sm:$0xff]
    %v546 = vld [vmem:[#allocation5 + $0x130] sm:$0xff]
    %v547 = vld [vmem:[#allocation5 + $0x138] sm:$0xff]
    %v548 = vld [vmem:[#allocation5 + $0x140] sm:$0xff]
    %v549 = vld [vmem:[#allocation5 + $0x148] sm:$0xff]
    %v550 = vld [vmem:[#allocation5 + $0x150] sm:$0xff]
    %v551 = vld [vmem:[#allocation5 + $0x158] sm:$0xff]
    %v552 = vld [vmem:[#allocation5 + $0x160] sm:$0xff]
    %v553 = vld [vmem:[#allocation5 + $0x168] sm:$0xff]
    %v554 = vld [vmem:[#allocation5 + $0x170] sm:$0xff]
    %v555 = vld [vmem:[#allocation5 + $0x178] sm:$0xff]
    %v556 = vunpack.c.l.bf16 %v460
    %v557 = vunpack.c.h.bf16 %v460
    %v558 = vunpack.c.l.bf16 %v461
    %v559 = vunpack.c.h.bf16 %v461
    %v560 = vunpack.c.l.bf16 %v462
    %v561 = vunpack.c.h.bf16 %v462
    %v562 = vunpack.c.l.bf16 %v463
    %v563 = vunpack.c.h.bf16 %v463
    %v564 = vunpack.c.l.bf16 %v464
    %v565 = vunpack.c.h.bf16 %v464
    %v566 = vunpack.c.l.bf16 %v465
    %v567 = vunpack.c.h.bf16 %v465
    %v568 = vunpack.c.l.bf16 %v466
    %v569 = vunpack.c.h.bf16 %v466
    %v570 = vunpack.c.l.bf16 %v467
    %v571 = vunpack.c.h.bf16 %v467
    %v572 = vunpack.c.l.bf16 %v468
    %v573 = vunpack.c.h.bf16 %v468
    %v574 = vunpack.c.l.bf16 %v469
    %v575 = vunpack.c.h.bf16 %v469
    %v576 = vunpack.c.l.bf16 %v470
    %v577 = vunpack.c.h.bf16 %v470
    %v578 = vunpack.c.l.bf16 %v471
    %v579 = vunpack.c.h.bf16 %v471
    %v580 = vunpack.c.l.bf16 %v472
    %v581 = vunpack.c.h.bf16 %v472
    %v582 = vunpack.c.l.bf16 %v473
    %v583 = vunpack.c.h.bf16 %v473
    %v584 = vunpack.c.l.bf16 %v474
    %v585 = vunpack.c.h.bf16 %v474
    %v586 = vunpack.c.l.bf16 %v475
    %v587 = vunpack.c.h.bf16 %v475
    %v588 = vunpack.c.l.bf16 %v476
    %v589 = vunpack.c.h.bf16 %v476
    %v590 = vunpack.c.l.bf16 %v477
    %v591 = vunpack.c.h.bf16 %v477
    %v592 = vunpack.c.l.bf16 %v478
    %v593 = vunpack.c.h.bf16 %v478
    %v594 = vunpack.c.l.bf16 %v479
    %v595 = vunpack.c.h.bf16 %v479
    %v596 = vunpack.c.l.bf16 %v480
    %v597 = vunpack.c.h.bf16 %v480
    %v598 = vunpack.c.l.bf16 %v481
    %v599 = vunpack.c.h.bf16 %v481
    %v600 = vunpack.c.l.bf16 %v482
    %v601 = vunpack.c.h.bf16 %v482
    %v602 = vunpack.c.l.bf16 %v483
    %v603 = vunpack.c.h.bf16 %v483
    %v604 = vunpack.c.l.bf16 %v484
    %v605 = vunpack.c.h.bf16 %v484
    %v606 = vunpack.c.l.bf16 %v485
    %v607 = vunpack.c.h.bf16 %v485
    %v608 = vunpack.c.l.bf16 %v486
    %v609 = vunpack.c.h.bf16 %v486
    %v610 = vunpack.c.l.bf16 %v487
    %v611 = vunpack.c.h.bf16 %v487
    %v612 = vunpack.c.l.bf16 %v488
    %v613 = vunpack.c.h.bf16 %v488
    %v614 = vunpack.c.l.bf16 %v489
    %v615 = vunpack.c.h.bf16 %v489
    %v616 = vunpack.c.l.bf16 %v490
    %v617 = vunpack.c.h.bf16 %v490
    %v618 = vunpack.c.l.bf16 %v491
    %v619 = vunpack.c.h.bf16 %v491
    %v620 = vunpack.c.l.bf16 %v492
    %v621 = vunpack.c.h.bf16 %v492
    %v622 = vunpack.c.l.bf16 %v493
    %v623 = vunpack.c.h.bf16 %v493
    %v624 = vunpack.c.l.bf16 %v494
    %v625 = vunpack.c.h.bf16 %v494
    %v626 = vunpack.c.l.bf16 %v495
    %v627 = vunpack.c.h.bf16 %v495
    %v628 = vunpack.c.l.bf16 %v496
    %v629 = vunpack.c.h.bf16 %v496
    %v630 = vunpack.c.l.bf16 %v497
    %v631 = vunpack.c.h.bf16 %v497
    %v632 = vunpack.c.l.bf16 %v498
    %v633 = vunpack.c.h.bf16 %v498
    %v634 = vunpack.c.l.bf16 %v499
    %v635 = vunpack.c.h.bf16 %v499
    %v636 = vunpack.c.l.bf16 %v500
    %v637 = vunpack.c.h.bf16 %v500
    %v638 = vunpack.c.l.bf16 %v501
    %v639 = vunpack.c.h.bf16 %v501
    %v640 = vunpack.c.l.bf16 %v502
    %v641 = vunpack.c.h.bf16 %v502
    %v642 = vunpack.c.l.bf16 %v503
    %v643 = vunpack.c.h.bf16 %v503
    %v644 = vunpack.c.l.bf16 %v504
    %v645 = vunpack.c.h.bf16 %v504
    %v646 = vunpack.c.l.bf16 %v505
    %v647 = vunpack.c.h.bf16 %v505
    %v648 = vunpack.c.l.bf16 %v506
    %v649 = vunpack.c.h.bf16 %v506
    %v650 = vunpack.c.l.bf16 %v507
    %v651 = vunpack.c.h.bf16 %v507
    %v652 = vunpack.c.l.bf16 %v508
    %v653 = vunpack.c.h.bf16 %v508
    %v654 = vunpack.c.l.bf16 %v509
    %v655 = vunpack.c.h.bf16 %v509
    %v656 = vunpack.c.l.bf16 %v510
    %v657 = vunpack.c.h.bf16 %v510
    %v658 = vunpack.c.l.bf16 %v511
    %v659 = vunpack.c.h.bf16 %v511
    %v660 = vunpack.c.l.bf16 %v512
    %v661 = vunpack.c.h.bf16 %v512
    %v662 = vunpack.c.l.bf16 %v513
    %v663 = vunpack.c.h.bf16 %v513
    %v664 = vunpack.c.l.bf16 %v514
    %v665 = vunpack.c.h.bf16 %v514
    %v666 = vunpack.c.l.bf16 %v515
    %v667 = vunpack.c.h.bf16 %v515
    %v668 = vunpack.c.l.bf16 %v516
    %v669 = vunpack.c.h.bf16 %v516
    %v670 = vunpack.c.l.bf16 %v517
    %v671 = vunpack.c.h.bf16 %v517
    %v672 = vunpack.c.l.bf16 %v518
    %v673 = vunpack.c.h.bf16 %v518
    %v674 = vunpack.c.l.bf16 %v519
    %v675 = vunpack.c.h.bf16 %v519
    %v676 = vunpack.c.l.bf16 %v520
    %v677 = vunpack.c.h.bf16 %v520
    %v678 = vunpack.c.l.bf16 %v521
    %v679 = vunpack.c.h.bf16 %v521
    %v680 = vunpack.c.l.bf16 %v522
    %v681 = vunpack.c.h.bf16 %v522
    %v682 = vunpack.c.l.bf16 %v523
    %v683 = vunpack.c.h.bf16 %v523
    %v684 = vunpack.c.l.bf16 %v524
    %v685 = vunpack.c.h.bf16 %v524
    %v686 = vunpack.c.l.bf16 %v525
    %v687 = vunpack.c.h.bf16 %v525
    %v688 = vunpack.c.l.bf16 %v526
    %v689 = vunpack.c.h.bf16 %v526
    %v690 = vunpack.c.l.bf16 %v527
    %v691 = vunpack.c.h.bf16 %v527
    %v692 = vunpack.c.l.bf16 %v528
    %v693 = vunpack.c.h.bf16 %v528
    %v694 = vunpack.c.l.bf16 %v529
    %v695 = vunpack.c.h.bf16 %v529
    %v696 = vunpack.c.l.bf16 %v530
    %v697 = vunpack.c.h.bf16 %v530
    %v698 = vunpack.c.l.bf16 %v531
    %v699 = vunpack.c.h.bf16 %v531
    %v700 = vunpack.c.l.bf16 %v532
    %v701 = vunpack.c.h.bf16 %v532
    %v702 = vunpack.c.l.bf16 %v533
    %v703 = vunpack.c.h.bf16 %v533
    %v704 = vunpack.c.l.bf16 %v534
    %v705 = vunpack.c.h.bf16 %v534
    %v706 = vunpack.c.l.bf16 %v535
    %v707 = vunpack.c.h.bf16 %v535
    %v708 = vunpack.c.l.bf16 %v536
    %v709 = vunpack.c.h.bf16 %v536
    %v710 = vunpack.c.l.bf16 %v537
    %v711 = vunpack.c.h.bf16 %v537
    %v712 = vunpack.c.l.bf16 %v538
    %v713 = vunpack.c.h.bf16 %v538
    %v714 = vunpack.c.l.bf16 %v539
    %v715 = vunpack.c.h.bf16 %v539
    %v716 = vunpack.c.l.bf16 %v540
    %v717 = vunpack.c.h.bf16 %v540
    %v718 = vunpack.c.l.bf16 %v541
    %v719 = vunpack.c.h.bf16 %v541
    %v720 = vunpack.c.l.bf16 %v542
    %v721 = vunpack.c.h.bf16 %v542
    %v722 = vunpack.c.l.bf16 %v543
    %v723 = vunpack.c.h.bf16 %v543
    %v724 = vunpack.c.l.bf16 %v544
    %v725 = vunpack.c.h.bf16 %v544
    %v726 = vunpack.c.l.bf16 %v545
    %v727 = vunpack.c.h.bf16 %v545
    %v728 = vunpack.c.l.bf16 %v546
    %v729 = vunpack.c.h.bf16 %v546
    %v730 = vunpack.c.l.bf16 %v547
    %v731 = vunpack.c.h.bf16 %v547
    %v732 = vunpack.c.l.bf16 %v548
    %v733 = vunpack.c.h.bf16 %v548
    %v734 = vunpack.c.l.bf16 %v549
    %v735 = vunpack.c.h.bf16 %v549
    %v736 = vunpack.c.l.bf16 %v550
    %v737 = vunpack.c.h.bf16 %v550
    %v738 = vunpack.c.l.bf16 %v551
    %v739 = vunpack.c.h.bf16 %v551
    %v740 = vunpack.c.l.bf16 %v552
    %v741 = vunpack.c.h.bf16 %v552
    %v742 = vunpack.c.l.bf16 %v553
    %v743 = vunpack.c.h.bf16 %v553
    %v744 = vunpack.c.l.bf16 %v554
    %v745 = vunpack.c.h.bf16 %v554
    %v746 = vunpack.c.l.bf16 %v555
    %v747 = vunpack.c.h.bf16 %v555
    %v748 = vmul.f32 %v652, %v364
    %v749 = vmul.f32 %v653, %v365
    %v750 = vmul.f32 %v654, %v366
    %v751 = vmul.f32 %v655, %v367
    %v752 = vmul.f32 %v656, %v368
    %v753 = vmul.f32 %v657, %v369
    %v754 = vmul.f32 %v658, %v370
    %v755 = vmul.f32 %v659, %v371
    %v756 = vmul.f32 %v660, %v372
    %v757 = vmul.f32 %v661, %v373
    %v758 = vmul.f32 %v662, %v374
    %v759 = vmul.f32 %v663, %v375
    %v760 = vmul.f32 %v664, %v376
    %v761 = vmul.f32 %v665, %v377
    %v762 = vmul.f32 %v666, %v378
    %v763 = vmul.f32 %v667, %v379
    %v764 = vmul.f32 %v668, %v380
    %v765 = vmul.f32 %v669, %v381
    %v766 = vmul.f32 %v670, %v382
    %v767 = vmul.f32 %v671, %v383
    %v768 = vmul.f32 %v672, %v384
    %v769 = vmul.f32 %v673, %v385
    %v770 = vmul.f32 %v674, %v386
    %v771 = vmul.f32 %v675, %v387
    %v772 = vmul.f32 %v676, %v388
    %v773 = vmul.f32 %v677, %v389
    %v774 = vmul.f32 %v678, %v390
    %v775 = vmul.f32 %v679, %v391
    %v776 = vmul.f32 %v680, %v392
    %v777 = vmul.f32 %v681, %v393
    %v778 = vmul.f32 %v682, %v394
    %v779 = vmul.f32 %v683, %v395
    %v780 = vmul.f32 %v684, %v396
    %v781 = vmul.f32 %v685, %v397
    %v782 = vmul.f32 %v686, %v398
    %v783 = vmul.f32 %v687, %v399
    %v784 = vmul.f32 %v688, %v400
    %v785 = vmul.f32 %v689, %v401
    %v786 = vmul.f32 %v690, %v402
    %v787 = vmul.f32 %v691, %v403
    %v788 = vmul.f32 %v692, %v404
    %v789 = vmul.f32 %v693, %v405
    %v790 = vmul.f32 %v694, %v406
    %v791 = vmul.f32 %v695, %v407
    %v792 = vmul.f32 %v696, %v408
    %v793 = vmul.f32 %v697, %v409
    %v794 = vmul.f32 %v698, %v410
    %v795 = vmul.f32 %v699, %v411
    %v796 = vmul.f32 %v700, %v412
    %v797 = vmul.f32 %v701, %v413
    %v798 = vmul.f32 %v702, %v414
    %v799 = vmul.f32 %v703, %v415
    %v800 = vmul.f32 %v704, %v416
    %v801 = vmul.f32 %v705, %v417
    %v802 = vmul.f32 %v706, %v418
    %v803 = vmul.f32 %v707, %v419
    %v804 = vmul.f32 %v708, %v420
    %v805 = vmul.f32 %v709, %v421
    %v806 = vmul.f32 %v710, %v422
    %v807 = vmul.f32 %v711, %v423
    %v808 = vmul.f32 %v712, %v424
    %v809 = vmul.f32 %v713, %v425
    %v810 = vmul.f32 %v714, %v426
    %v811 = vmul.f32 %v715, %v427
    %v812 = vmul.f32 %v716, %v428
    %v813 = vmul.f32 %v717, %v429
    %v814 = vmul.f32 %v718, %v430
    %v815 = vmul.f32 %v719, %v431
    %v816 = vmul.f32 %v720, %v432
    %v817 = vmul.f32 %v721, %v433
    %v818 = vmul.f32 %v722, %v434
    %v819 = vmul.f32 %v723, %v435
    %v820 = vmul.f32 %v724, %v436
    %v821 = vmul.f32 %v725, %v437
    %v822 = vmul.f32 %v726, %v438
    %v823 = vmul.f32 %v727, %v439
    %v824 = vmul.f32 %v728, %v440
    %v825 = vmul.f32 %v729, %v441
    %v826 = vmul.f32 %v730, %v442
    %v827 = vmul.f32 %v731, %v443
    %v828 = vmul.f32 %v732, %v444
    %v829 = vmul.f32 %v733, %v445
    %v830 = vmul.f32 %v734, %v446
    %v831 = vmul.f32 %v735, %v447
    %v832 = vmul.f32 %v736, %v448
    %v833 = vmul.f32 %v737, %v449
    %v834 = vmul.f32 %v738, %v450
    %v835 = vmul.f32 %v739, %v451
    %v836 = vmul.f32 %v740, %v452
    %v837 = vmul.f32 %v741, %v453
    %v838 = vmul.f32 %v742, %v454
    %v839 = vmul.f32 %v743, %v455
    %v840 = vmul.f32 %v744, %v456
    %v841 = vmul.f32 %v745, %v457
    %v842 = vmul.f32 %v746, %v458
    %v843 = vmul.f32 %v747, %v459
    %v844 = vadd.f32 %v556, %v748
    %v845 = vadd.f32 %v557, %v749
    %v846 = vadd.f32 %v558, %v750
    %v847 = vadd.f32 %v559, %v751
    %v848 = vadd.f32 %v560, %v752
    %v849 = vadd.f32 %v561, %v753
    %v850 = vadd.f32 %v562, %v754
    %v851 = vadd.f32 %v563, %v755
    %v852 = vadd.f32 %v564, %v756
    %v853 = vadd.f32 %v565, %v757
    %v854 = vadd.f32 %v566, %v758
    %v855 = vadd.f32 %v567, %v759
    %v856 = vadd.f32 %v568, %v760
    %v857 = vadd.f32 %v569, %v761
    %v858 = vadd.f32 %v570, %v762
    %v859 = vadd.f32 %v571, %v763
    %v860 = vadd.f32 %v572, %v764
    %v861 = vadd.f32 %v573, %v765
    %v862 = vadd.f32 %v574, %v766
    %v863 = vadd.f32 %v575, %v767
    %v864 = vadd.f32 %v576, %v768
    %v865 = vadd.f32 %v577, %v769
    %v866 = vadd.f32 %v578, %v770
    %v867 = vadd.f32 %v579, %v771
    %v868 = vadd.f32 %v580, %v772
    %v869 = vadd.f32 %v581, %v773
    %v870 = vadd.f32 %v582, %v774
    %v871 = vadd.f32 %v583, %v775
    %v872 = vadd.f32 %v584, %v776
    %v873 = vadd.f32 %v585, %v777
    %v874 = vadd.f32 %v586, %v778
    %v875 = vadd.f32 %v587, %v779
    %v876 = vadd.f32 %v588, %v780
    %v877 = vadd.f32 %v589, %v781
    %v878 = vadd.f32 %v590, %v782
    %v879 = vadd.f32 %v591, %v783
    %v880 = vadd.f32 %v592, %v784
    %v881 = vadd.f32 %v593, %v785
    %v882 = vadd.f32 %v594, %v786
    %v883 = vadd.f32 %v595, %v787
    %v884 = vadd.f32 %v596, %v788
    %v885 = vadd.f32 %v597, %v789
    %v886 = vadd.f32 %v598, %v790
    %v887 = vadd.f32 %v599, %v791
    %v888 = vadd.f32 %v600, %v792
    %v889 = vadd.f32 %v601, %v793
    %v890 = vadd.f32 %v602, %v794
    %v891 = vadd.f32 %v603, %v795
    %v892 = vadd.f32 %v604, %v796
    %v893 = vadd.f32 %v605, %v797
    %v894 = vadd.f32 %v606, %v798
    %v895 = vadd.f32 %v607, %v799
    %v896 = vadd.f32 %v608, %v800
    %v897 = vadd.f32 %v609, %v801
    %v898 = vadd.f32 %v610, %v802
    %v899 = vadd.f32 %v611, %v803
    %v900 = vadd.f32 %v612, %v804
    %v901 = vadd.f32 %v613, %v805
    %v902 = vadd.f32 %v614, %v806
    %v903 = vadd.f32 %v615, %v807
    %v904 = vadd.f32 %v616, %v808
    %v905 = vadd.f32 %v617, %v809
    %v906 = vadd.f32 %v618, %v810
    %v907 = vadd.f32 %v619, %v811
    %v908 = vadd.f32 %v620, %v812
    %v909 = vadd.f32 %v621, %v813
    %v910 = vadd.f32 %v622, %v814
    %v911 = vadd.f32 %v623, %v815
    %v912 = vadd.f32 %v624, %v816
    %v913 = vadd.f32 %v625, %v817
    %v914 = vadd.f32 %v626, %v818
    %v915 = vadd.f32 %v627, %v819
    %v916 = vadd.f32 %v628, %v820
    %v917 = vadd.f32 %v629, %v821
    %v918 = vadd.f32 %v630, %v822
    %v919 = vadd.f32 %v631, %v823
    %v920 = vadd.f32 %v632, %v824
    %v921 = vadd.f32 %v633, %v825
    %v922 = vadd.f32 %v634, %v826
    %v923 = vadd.f32 %v635, %v827
    %v924 = vadd.f32 %v636, %v828
    %v925 = vadd.f32 %v637, %v829
    %v926 = vadd.f32 %v638, %v830
    %v927 = vadd.f32 %v639, %v831
    %v928 = vadd.f32 %v640, %v832
    %v929 = vadd.f32 %v641, %v833
    %v930 = vadd.f32 %v642, %v834
    %v931 = vadd.f32 %v643, %v835
    %v932 = vadd.f32 %v644, %v836
    %v933 = vadd.f32 %v645, %v837
    %v934 = vadd.f32 %v646, %v838
    %v935 = vadd.f32 %v647, %v839
    %v936 = vadd.f32 %v648, %v840
    %v937 = vadd.f32 %v649, %v841
    %v938 = vadd.f32 %v650, %v842
    %v939 = vadd.f32 %v651, %v843
    %v940 = vpack.c.bf16 %v846, %v844
    %v941 = vpack.c.bf16 %v847, %v845
    %v942 = vpack.c.bf16 %v850, %v848
    %v943 = vpack.c.bf16 %v851, %v849
    %v944 = vpack.c.bf16 %v854, %v852
    %v945 = vpack.c.bf16 %v855, %v853
    %v946 = vpack.c.bf16 %v858, %v856
    %v947 = vpack.c.bf16 %v859, %v857
    %v948 = vpack.c.bf16 %v862, %v860
    %v949 = vpack.c.bf16 %v863, %v861
    %v950 = vpack.c.bf16 %v866, %v864
    %v951 = vpack.c.bf16 %v867, %v865
    %v952 = vpack.c.bf16 %v870, %v868
    %v953 = vpack.c.bf16 %v871, %v869
    %v954 = vpack.c.bf16 %v874, %v872
    %v955 = vpack.c.bf16 %v875, %v873
    %v956 = vpack.c.bf16 %v878, %v876
    %v957 = vpack.c.bf16 %v879, %v877
    %v958 = vpack.c.bf16 %v882, %v880
    %v959 = vpack.c.bf16 %v883, %v881
    %v960 = vpack.c.bf16 %v886, %v884
    %v961 = vpack.c.bf16 %v887, %v885
    %v962 = vpack.c.bf16 %v890, %v888
    %v963 = vpack.c.bf16 %v891, %v889
    %v964 = vpack.c.bf16 %v894, %v892
    %v965 = vpack.c.bf16 %v895, %v893
    %v966 = vpack.c.bf16 %v898, %v896
    %v967 = vpack.c.bf16 %v899, %v897
    %v968 = vpack.c.bf16 %v902, %v900
    %v969 = vpack.c.bf16 %v903, %v901
    %v970 = vpack.c.bf16 %v906, %v904
    %v971 = vpack.c.bf16 %v907, %v905
    %v972 = vpack.c.bf16 %v910, %v908
    %v973 = vpack.c.bf16 %v911, %v909
    %v974 = vpack.c.bf16 %v914, %v912
    %v975 = vpack.c.bf16 %v915, %v913
    %v976 = vpack.c.bf16 %v918, %v916
    %v977 = vpack.c.bf16 %v919, %v917
    %v978 = vpack.c.bf16 %v922, %v920
    %v979 = vpack.c.bf16 %v923, %v921
    %v980 = vpack.c.bf16 %v926, %v924
    %v981 = vpack.c.bf16 %v927, %v925
    %v982 = vpack.c.bf16 %v930, %v928
    %v983 = vpack.c.bf16 %v931, %v929
    %v984 = vpack.c.bf16 %v934, %v932
    %v985 = vpack.c.bf16 %v935, %v933
    %v986 = vpack.c.bf16 %v938, %v936
    %v987 = vpack.c.bf16 %v939, %v937
    %v988 = vld [vmem:[#allocation2] sm:$0xff]
    %v989 = vld [vmem:[#allocation2 + $0x8] sm:$0xf]
    %v990 = vld [vmem:[#allocation2 + $0xc] sm:$0xff]
    %v991 = vld [vmem:[#allocation2 + $0x14] sm:$0xf]
    %v992 = vld [vmem:[#allocation7] sm:$0xff]
    %v993 = vld [vmem:[#allocation7 + $0x8] sm:$0xff]
    %v994 = vld [vmem:[#allocation7 + $0x10] sm:$0xff]
    %v995 = vld [vmem:[#allocation7 + $0x18] sm:$0xff]
    %v1000 = vunpack.c.l.b16 %v988
    %v1001 = vunpack.c.h.b16 %v988
    %v1002 = vunpack.c.l.b16 %v989
    %v1003 = vunpack.c.l.b16 %v990
    %v1004 = vunpack.c.h.b16 %v990
    %v1005 = vunpack.c.l.b16 %v991
    %v1006 = vpack.c.b16 %v1003, %v1000
    %v1007 = vpack.c.b16 %v1004, %v1001
    %v1008 = vpack.c.b16 %v1005, %v1002
    %1012 = vmatprep.subr.bf16.mxu0 %v941
    %1013 = vmatpush1.bf16.msra.mxu0 %v940
    %1014 = vmatprep.subr.bf16.mxu0 %v943
    %1015 = vmatpush1.bf16.msra.mxu0 %v942
    %1016 = vmatprep.subr.bf16.mxu0 %v945
    %1017 = vmatpush1.bf16.msra.mxu0 %v944
    %1018 = vmatprep.subr.bf16.mxu0 %v947
    %1019 = vmatpush1.bf16.msra.mxu0 %v946
    %1020 = vmatprep.subr.bf16.mxu0 %v949
    %1021 = vmatpush1.bf16.msra.mxu0 %v948
    %1022 = vmatprep.subr.bf16.mxu0 %v951
    %1023 = vmatpush1.bf16.msra.mxu0 %v950
    %1024 = vmatprep.subr.bf16.mxu0 %v953
    %1025 = vmatpush1.bf16.msra.mxu0 %v952
    %1026 = vmatprep.subr.bf16.mxu0 %v955
    %1027 = vmatpush1.bf16.msra.mxu0 %v954
    %1028 = vmatprep.subr.bf16.mxu0 %v957
    %1029 = vmatpush1.bf16.msra.mxu0 %v956
    %1030 = vmatprep.subr.bf16.mxu0 %v959
    %1031 = vmatpush1.bf16.msra.mxu0 %v958
    %1032 = vmatprep.subr.bf16.mxu0 %v961
    %1033 = vmatpush1.bf16.msra.mxu0 %v960
    %1034 = vmatprep.subr.bf16.mxu0 %v963
    %1035 = vmatpush1.bf16.msra.mxu0 %v962
    %1036 = vmatprep.subr.bf16.mxu0 %v965
    %1037 = vmatpush1.bf16.msra.mxu0 %v964
    %1038 = vmatprep.subr.bf16.mxu0 %v967
    %1039 = vmatpush1.bf16.msra.mxu0 %v966
    %1040 = vmatprep.subr.bf16.mxu0 %v969
    %1041 = vmatpush1.bf16.msra.mxu0 %v968
    %1042 = vmatprep.subr.bf16.mxu0 %v971
    %1043 = vmatpush1.bf16.msra.mxu0 %v970
    %1044 = vmatprep.mubr.bf16.mxu0 %v1007
    %1045 = vmatmul.mubr.bf16.gmra.mrb[0].mxu0 %v1006
    %v1046 = vpop.f32.mrb[0].mxu0
    %v1047 = vadd.f32 0.0, %v1046
    %v1048 = vpop.f32.mrb[0].mxu0
    %v1049 = vadd.f32 0.0, %v1048
    %v1050 = vpop.f32.mrb[0].mxu0
    %v1051 = vadd.f32 0.0, %v1050
    %v1052 = vpop.f32.mrb[0].mxu0
    %v1053 = vadd.f32 0.0, %v1052
    %1054 = vdwg.mxu0
    %1055 = vmatprep.subr.bf16.mxu0 %v973
    %1056 = vmatpush1.bf16.msra.mxu0 %v972
    %1057 = vmatprep.subr.bf16.mxu0 %v975
    %1058 = vmatpush1.bf16.msra.mxu0 %v974
    %1059 = vmatprep.subr.bf16.mxu0 %v977
    %1060 = vmatpush1.bf16.msra.mxu0 %v976
    %1061 = vmatprep.subr.bf16.mxu0 %v979
    %1062 = vmatpush1.bf16.msra.mxu0 %v978
    %1063 = vmatprep.subr.bf16.mxu0 %v981
    %1064 = vmatpush1.bf16.msra.mxu0 %v980
    %1065 = vmatprep.subr.bf16.mxu0 %v983
    %1066 = vmatpush1.bf16.msra.mxu0 %v982
    %1067 = vmatprep.subr.bf16.mxu0 %v985
    %1068 = vmatpush1.bf16.msra.mxu0 %v984
    %1069 = vmatprep.subr.bf16.mxu0 %v987
    %1070 = vmatpush1.bf16.msra.mxu0 %v986
    %1071 = vmatprep.subr.bf16.mxu0 0
    %1072 = vmatpush1.bf16.msra.mxu0 0
    %1073 = vmatprep.subr.bf16.mxu0 0
    %1074 = vmatpush1.bf16.msra.mxu0 0
    %1075 = vmatprep.subr.bf16.mxu0 0
    %1076 = vmatpush1.bf16.msra.mxu0 0
    %1077 = vmatprep.subr.bf16.mxu0 0
    %1078 = vmatpush1.bf16.msra.mxu0 0
    %1079 = vmatprep.subr.bf16.mxu0 0
    %1080 = vmatpush1.bf16.msra.mxu0 0
    %1081 = vmatprep.subr.bf16.mxu0 0
    %1082 = vmatpush1.bf16.msra.mxu0 0
    %1083 = vmatprep.subr.bf16.mxu0 0
    %1084 = vmatpush1.bf16.msra.mxu0 0
    %1085 = vmatprep.subr.bf16.mxu0 0
    %1086 = vmatpush1.bf16.msra.mxu0 0
    %1087 = vmatprep.mubr.bf16.mxu0 0
    %1088 = vmatmul.mubr.bf16.gmra.mrb[0].mxu0 %v1008
    %v1089 = vpop.f32.mrb[0].mxu0
    %v1090 = vadd.f32 %v1047, %v1089
    %v1091 = vpop.f32.mrb[0].mxu0
    %v1092 = vadd.f32 %v1049, %v1091
    %v1093 = vpop.f32.mrb[0].mxu0
    %v1094 = vadd.f32 %v1051, %v1093
    %v1095 = vpop.f32.mrb[0].mxu0
    %v1096 = vadd.f32 %v1053, %v1095
    %1097 = vdwg.mxu0
    %v1098 = vadd.f32 %v992, %v1090
    %v1099 = vadd.f32 %v993, %v1092
    %v1100 = vadd.f32 %v994, %v1094
    %v1101 = vadd.f32 %v995, %v1096
    %1102 = vst [vmem:[#allocation7] sm:$0xff] %v1098
    %1103 = vst [vmem:[#allocation7 + $0x8] sm:$0xff] %v1099
    %1104 = vst [vmem:[#allocation7 + $0x10] sm:$0xff] %v1100
    %1105 = vst [vmem:[#allocation7 + $0x18] sm:$0xff] %v1101
    // Predicated region
    $region42: #{tpu_custom_call.1} parent=1 // pred_check
      %p1106 = pneg %p56
    $region43: #{tpu_custom_call.1} parent=1 // pred_check_branch
      %1108 = sbr.rel (%p1106) target = $region45
    $region44: #{tpu_custom_call.1} parent=1 // pred_region
      %v1109 = vld [vmem:[%s5] sm:$0x3]
      %v1110 = vld [vmem:[%s6] sm:$0x3]
      %v1111 = vld [vmem:[%s4] sm:$0x3]
      %v1112 = vmul.f32 %v1110, %v1111
      %v1113 = vadd.f32 %v1109, %v1112
      %v1114 = vld [vmem:[#allocation7] sm:$0xff]
      %v1115 = vld [vmem:[#allocation7 + $0x8] sm:$0xff]
      %v1116 = vld [vmem:[#allocation7 + $0x10] sm:$0xff]
      %v1117 = vld [vmem:[#allocation7 + $0x18] sm:$0xff]
      %v1119 = vlaneseq
      %v1120 = vshrl.u32 %v1119, 7
      %v1121 = vsub.s32 0, %v1120
      %v1122 = vrot.slane %v1113, %v1121
      %v1123 = vlaneseq
      %v1124 = vshrl.u32 %v1123, 7
      %v1125 = vsub.s32 1, %v1124
      %v1126 = vrot.slane %v1113, %v1125
      %v1129 = vadd.f32 %v1114, %v1122
      %v1130 = vadd.f32 %v1115, %v1126
      %v1131 = vadd.f32 %v1116, %v1122
      %v1132 = vadd.f32 %v1117, %v1126
      %1133 = vst [vmem:[#allocation7] sm:$0xff] %v1129
      %1134 = vst [vmem:[#allocation7 + $0x8] sm:$0xff] %v1130
      %1135 = vst [vmem:[#allocation7 + $0x10] sm:$0xff] %v1131
      %1136 = vst [vmem:[#allocation7 + $0x18] sm:$0xff] %v1132
    $region45: #{tpu_custom_call.1} parent=1 // pred_fallthru
      _
    // Predicated region
    $region46: #{tpu_custom_call.1} parent=1 // pred_check
      _
    $region47: #{tpu_custom_call.1} parent=1 // pred_check_branch
      %1138 = sbr.rel (0) target = $region49
    $region48: #{tpu_custom_call.1} parent=1 // pred_region
      %s1140 = ssub.s32 512, 512
      %1141 = vsyncadd [#allocation4], %s1140
      %s1142 = sshll.u32 [#allocation7], 4
      %s1143 = int_to_ptr.vmem [resolvable:$true] %s1142
      %1148 = dma.vmem_to_hbm [thread:$0]  %s1143, 512, %s7, [#allocation4], 256, 256, 16
    $region49: #{tpu_custom_call.1} parent=1 // pred_fallthru
      _
    // Predicated region
    $region50: #{tpu_custom_call.1} parent=1 // pred_check
      _
    $region51: #{tpu_custom_call.1} parent=1 // pred_check_branch
      %1150 = sbr.rel (0) target = $region53
    $region52: #{tpu_custom_call.1} parent=1 // pred_region
      %1151 = dma.done [#allocation4], 512
    $region53: #{tpu_custom_call.1} parent=1 // pred_fallthru
      _
    %1152 = vsyncpa [#allocation3], 1
    %1153 = vsyncpa [#allocation6], 1
    %1154 = vsyncpa [#allocation4], 1

</llo_original>
